<compile_context>
chip_gen: v5e
topology: v5e:2x2
jax: 0.10.0
libtpu: 0.0.40
codegen_flags: <defaults>
</compile_context>

<pallas_src>
import functools
import math

import jax
import jax.numpy as jnp
from jax.experimental import pallas as pl
from jax.experimental.pallas import tpu as pltpu


# ---------------------------------------------------------------------------
# Kernel 1: fused  out = LayerNorm( MHA(x, ctx, ctx, mask) + x )
# ---------------------------------------------------------------------------
def _mha_ln_kernel(x_ref, ctx_ref, wq_ref, wkv_ref, wo_ref, bo_ref,
                   g_ref, beta_ref, o_ref, *, num_heads, head_dim, eps):
    """One (batch, q-tile) grid point.

    x_ref    : (1, TQ, D)    queries tile (also the residual input)
    ctx_ref  : (1, TK, D)    full key/value context
    wq_ref   : (D, H*hd)     fused all-head query projection
    wkv_ref  : (D, 2*H*hd)   fused all-head key|value projection
    wo_ref   : (H*hd, D)     output projection (pre-transposed: y = cat @ wo)
    bo_ref   : (1, D)  f32   output projection bias
    g_ref    : (1, D)  f32   LayerNorm gamma
    beta_ref : (1, D)  f32   LayerNorm beta
    o_ref    : (1, TQ, D)
    """
    x = x_ref[0]                      # (TQ, D)  compute dtype
    ctx = ctx_ref[0]                  # (TK, D)
    tq, tk = x.shape[0], ctx.shape[0]
    hd = head_dim
    hdim = num_heads * hd
    cd = x.dtype

    # Fused projections — one wide-N matmul for Q, one for K|V, f32 accumulate.
    scale = 1.0 / math.sqrt(hd)
    qh = (jnp.dot(x, wq_ref[...], preferred_element_type=jnp.float32)
          * scale).astype(cd)                                   # (TQ, H*hd)
    kv = jnp.dot(ctx, wkv_ref[...], preferred_element_type=jnp.float32)
    kh = kv[:, :hdim].astype(cd)                                # (TK, H*hd)
    vh = kv[:, hdim:].astype(cd)                                # (TK, H*hd)

    # Reference mask: torch.triu(ones(T, T), 0) > 0  <=>  keep (i, j) iff j >= i.
    row0 = pl.program_id(1) * tq
    rows = row0 + jax.lax.broadcasted_iota(jnp.int32, (tq, tk), 0)
    cols = jax.lax.broadcasted_iota(jnp.int32, (tq, tk), 1)
    keep = cols >= rows
    neg = jnp.float32(-1e30)

    dims = (((1,), (1,)), ((), ()))     # contract last dims (no kh transpose)
    heads = []
    for h in range(num_heads):
        sl = slice(h * hd, (h + 1) * hd)
        s = jax.lax.dot_general(qh[:, sl], kh[:, sl], dims,
                                preferred_element_type=jnp.float32)  # (TQ, TK)
        s = jnp.where(keep, s, neg)
        m = jnp.max(s, axis=-1, keepdims=True)
        p = jnp.exp(s - m)
        inv = pl.reciprocal(jnp.sum(p, axis=-1, keepdims=True), approx=True)
        att = (p * inv).astype(cd)
        heads.append(jnp.dot(att, vh[:, sl],
                             preferred_element_type=jnp.float32))    # (TQ, hd)
    # TODO(synk): for long sequences add a TK grid axis with online softmax
    # (flash-style running m/l/acc) so the dense (TQ, TK) scores never
    # materialize; needed to fit v7x's 64 MiB VMEM at production sizes.
    cat = jnp.concatenate(heads, axis=-1).astype(cd)                 # (TQ, H*hd)

    # Output projection + residual + LayerNorm, all fused (lane-dense store).
    y = jnp.dot(cat, wo_ref[...], preferred_element_type=jnp.float32)
    y = y + bo_ref[...] + x.astype(jnp.float32)                      # (TQ, D)

    mean = jnp.mean(y, axis=-1, keepdims=True)
    c = y - mean
    var = jnp.mean(c * c, axis=-1, keepdims=True)
    yn = c * jax.lax.rsqrt(var + eps)
    o_ref[0] = (yn * g_ref[...] + beta_ref[...]).astype(o_ref.dtype)


def _self_mha_ln_kernel(x_ref, wq_ref, wkv_ref, wo_ref, bo_ref,
                        g_ref, beta_ref, o_ref, *, num_heads, head_dim, eps):
    """Self-attention variant: a single DMA of x serves q, k and v."""
    _mha_ln_kernel(x_ref, x_ref, wq_ref, wkv_ref, wo_ref, bo_ref,
                   g_ref, beta_ref, o_ref,
                   num_heads=num_heads, head_dim=head_dim, eps=eps)


def _mha_ln_layer(x, ctx, mp, lnp, *, num_heads, eps, self_attention,
                  q_tile=256):
    """out = LayerNorm(MultiHeadAttention(x, ctx, ctx, mask) + x)."""
    B, T, D = x.shape
    Tk = ctx.shape[1]
    hd = D // num_heads
    hdim = num_heads * hd
    cd = x.dtype

    TQ = T if T <= q_tile else q_tile
    assert T % TQ == 0, "sequence length must be divisible by the q tile"
    nq = T // TQ
    share_x = self_attention and nq == 1      # single DMA of x feeds q/k/v

    wq = mp["wq"].astype(cd)
    wkv = mp["wkv"].astype(cd)
    wo = mp["wo"].astype(cd)
    bo = mp["bo"].reshape(1, D).astype(jnp.float32)
    ln_g = lnp["g"].reshape(1, D).astype(jnp.float32)
    ln_b = lnp["b"].reshape(1, D).astype(jnp.float32)

    kern = functools.partial(
        _self_mha_ln_kernel if share_x else _mha_ln_kernel,
        num_heads=num_heads, head_dim=hd, eps=eps)

    x_spec = pl.BlockSpec((1, TQ, D), lambda bi, qi: (bi, qi, 0))
    ctx_spec = pl.BlockSpec((1, Tk, D), lambda bi, qi: (bi, 0, 0))

    def full2d(shape):
        return pl.BlockSpec(shape, lambda bi, qi: (0, 0))

    in_specs = [x_spec]
    inputs = [x]
    if not share_x:
        in_specs.append(ctx_spec)
        inputs.append(ctx)
    in_specs += [full2d((D, hdim)), full2d((D, 2 * hdim)), full2d((hdim, D)),
                 full2d((1, D)), full2d((1, D)), full2d((1, D))]
    inputs += [wq, wkv, wo, bo, ln_g, ln_b]

    return pl.pallas_call(
        kern,
        out_shape=jax.ShapeDtypeStruct((B, T, D), cd),
        grid=(B, nq),
        in_specs=in_specs,
        out_specs=pl.BlockSpec((1, TQ, D), lambda bi, qi: (bi, qi, 0)),
        compiler_params=pltpu.CompilerParams(
            dimension_semantics=("parallel", "parallel")),
    )(*inputs)


# ---------------------------------------------------------------------------
# Kernel 2: fused  out = LayerNorm( ReLU(x @ W1 + b1) @ W2 + b2 + x )
# ---------------------------------------------------------------------------
def _ffn_ln_kernel(x_ref, w1_ref, b1_ref, w2_ref, b2_ref, g_ref, beta_ref,
                   o_ref, *, eps):
    x = x_ref[...]                                                 # (TM, D)
    h = jnp.dot(x, w1_ref[...], preferred_element_type=jnp.float32)
    h = jnp.maximum(h + b1_ref[...], 0.0).astype(w2_ref.dtype)     # ReLU
    y = jnp.dot(h, w2_ref[...], preferred_element_type=jnp.float32)
    y = y + b2_ref[...] + x.astype(jnp.float32)                    # bias + residual

    mean = jnp.mean(y, axis=-1, keepdims=True)
    c = y - mean
    var = jnp.mean(c * c, axis=-1, keepdims=True)
    yn = c * jax.lax.rsqrt(var + eps)
    o_ref[...] = (yn * g_ref[...] + beta_ref[...]).astype(o_ref.dtype)


def _ffn_ln_layer(x, fp, lnp, *, eps, row_tile=512):
    B, T, D = x.shape
    d_ff = fp["w1"].shape[1]
    cd = x.dtype
    rows = B * T
    xr = x.reshape(rows, D)

    TM = rows if rows <= row_tile else row_tile
    assert rows % TM == 0, "B*T must be divisible by the row tile"

    w1 = fp["w1"].astype(cd)
    w2 = fp["w2"].astype(cd)
    b1 = fp["b1"].reshape(1, d_ff).astype(jnp.float32)
    b2 = fp["b2"].reshape(1, D).astype(jnp.float32)
    ln_g = lnp["g"].reshape(1, D).astype(jnp.float32)
    ln_b = lnp["b"].reshape(1, D).astype(jnp.float32)

    out = pl.pallas_call(
        functools.partial(_ffn_ln_kernel, eps=eps),
        out_shape=jax.ShapeDtypeStruct((rows, D), cd),
        grid=(rows // TM,),
        in_specs=[
            pl.BlockSpec((TM, D), lambda i: (i, 0)),
            pl.BlockSpec((D, d_ff), lambda i: (0, 0)),
            pl.BlockSpec((1, d_ff), lambda i: (0, 0)),
            pl.BlockSpec((d_ff, D), lambda i: (0, 0)),
            pl.BlockSpec((1, D), lambda i: (0, 0)),
            pl.BlockSpec((1, D), lambda i: (0, 0)),
            pl.BlockSpec((1, D), lambda i: (0, 0)),
        ],
        out_specs=pl.BlockSpec((TM, D), lambda i: (i, 0)),
        compiler_params=pltpu.CompilerParams(
            dimension_semantics=("parallel",)),
    )(xr, w1, b1, w2, b2, ln_g, ln_b)
    return out.reshape(B, T, D)


# ---------------------------------------------------------------------------
# Full decoder layer
# ---------------------------------------------------------------------------
def transformer_decoder_layer(x, x_enc, params, *, compute_dtype=jnp.float32,
                              eps=1e-5):
    """Forward pass of the PyTorch TransformerDecoderLayer."""
    num_heads = params["num_heads"]
    xc = x.astype(compute_dtype)
    ec = x_enc.astype(compute_dtype)

    h1 = _mha_ln_layer(xc, xc, params["mask_mha"], params["norm1"],
                       num_heads=num_heads, eps=eps, self_attention=True)
    h2 = _mha_ln_layer(h1, ec, params["mha"], params["norm2"],
                       num_heads=num_heads, eps=eps, self_attention=False)
    return _ffn_ln_layer(h2, params["ffn"], params["norm3"], eps=eps)


# ---------------------------------------------------------------------------
# Plain-JAX reference mirroring the PyTorch forward
# ---------------------------------------------------------------------------
def _reference(x, x_enc, params, eps=1e-5):
    H = params["num_heads"]
    D = x.shape[-1]
    hd = D // H
    hdim = H * hd
    T = x.shape[1]

    rows = jax.lax.broadcasted_iota(jnp.int32, (T, T), 0)
    cols = jax.lax.broadcasted_iota(jnp.int32, (T, T), 1)
    keep = cols >= rows            # torch.triu(ones(T, T), 0) > 0

    def mha(q, kv, mp):
        qh = q @ mp["wq"]
        kh = kv @ mp["wkv"][:, :hdim]
        vh = kv @ mp["wkv"][:, hdim:]
        outs = []
        for h in range(H):
            sl = slice(h * hd, (h + 1) * hd)
            att = jnp.einsum("btd,bsd->bts", qh[..., sl], kh[..., sl])
            att = att / math.sqrt(hd)
            att = jnp.where(keep[None], att, -jnp.inf)
            att = jax.nn.softmax(att, axis=-1)
            outs.append(jnp.einsum("bts,bsd->btd", att, vh[..., sl]))
        return jnp.concatenate(outs, axis=-1) @ mp["wo"] + mp["bo"]

    def ln(y, lnp):
        mean = y.mean(-1, keepdims=True)
        var = ((y - mean) ** 2).mean(-1, keepdims=True)
        return (y - mean) / jnp.sqrt(var + eps) * lnp["g"] + lnp["b"]

    x1 = ln(mha(x, x, params["mask_mha"]) + x, params["norm1"])
    x2 = ln(mha(x1, x_enc, params["mha"]) + x1, params["norm2"])
    f = params["ffn"]
    y = jnp.maximum(x2 @ f["w1"] + f["b1"], 0.0) @ f["w2"] + f["b2"]
    return ln(y + x2, params["norm3"])


if __name__ == "__main__":
    # Small shapes consistent with the module: h_dim=32, num_heads=4, d_ff=64.
    B, T, D, H, d_ff = 2, 8, 32, 4, 64
    hd = D // H
    hdim = H * hd

    key = jax.random.PRNGKey(0)
    ks = list(jax.random.split(key, 20))

    def rnd(k, shape, s=0.1):
        return s * jax.random.normal(k, shape, jnp.float32)

    # Projection weights are stored pre-transposed (x @ W form); wkv stacks the
    # per-head K and V projections along the output axis; wo is [H*hd, D].
    params = {
        "num_heads": H,
        "mask_mha": {"wq": rnd(ks[0], (D, hdim)),
                     "wkv": rnd(ks[1], (D, 2 * hdim)),
                     "wo": rnd(ks[2], (hdim, D)),
                     "bo": rnd(ks[3], (D,))},
        "mha": {"wq": rnd(ks[4], (D, hdim)),
                "wkv": rnd(ks[5], (D, 2 * hdim)),
                "wo": rnd(ks[6], (hdim, D)),
                "bo": rnd(ks[7], (D,))},
        "ffn": {"w1": rnd(ks[8], (D, d_ff)),
                "b1": rnd(ks[9], (d_ff,)),
                "w2": rnd(ks[10], (d_ff, D)),
                "b2": rnd(ks[11], (D,))},
        "norm1": {"g": 1.0 + rnd(ks[12], (D,)), "b": rnd(ks[13], (D,))},
        "norm2": {"g": 1.0 + rnd(ks[14], (D,)), "b": rnd(ks[15], (D,))},
        "norm3": {"g": 1.0 + rnd(ks[16], (D,)), "b": rnd(ks[17], (D,))},
    }

    x = jax.random.normal(ks[18], (B, T, D), jnp.float32)
    x_enc = jax.random.normal(ks[19], (B, T, D), jnp.float32)  # T_enc == T (mask shape)

    ref = _reference(x, x_enc, params)

    # f32 path (tight check; only the approx softmax reciprocal deviates)
    out = transformer_decoder_layer(x, x_enc, params)
    out = jax.block_until_ready(out)
    assert out.shape == (B, T, D), out.shape
    err = float(jnp.max(jnp.abs(out - ref)))
    assert err < 1e-2, f"f32 kernel mismatch vs reference: max|diff|={err}"

    # bf16 storage / MXU path with f32 accumulation (loose check)
    out_bf16 = transformer_decoder_layer(x, x_enc, params,
                                         compute_dtype=jnp.bfloat16)
    out_bf16 = jax.block_until_ready(out_bf16)
    err_bf16 = float(jnp.max(jnp.abs(out_bf16.astype(jnp.float32) - ref)))
    assert err_bf16 < 2e-1, f"bf16 kernel mismatch vs reference: max|diff|={err_bf16}"

    print("KERNEL_OK")
</pallas_src>

<mosaic_0001>
module attributes {stable_mosaic.version = 11 : i64} {
  func.func @_self_mha_ln_kernel(%arg0: i32, %arg1: i32, %arg2: memref<1x8x32xf32, #tpu.memory_space<vmem>>, %arg3: memref<32x32xf32, #tpu.memory_space<vmem>>, %arg4: memref<32x64xf32, #tpu.memory_space<vmem>>, %arg5: memref<32x32xf32, #tpu.memory_space<vmem>>, %arg6: memref<1x32xf32, #tpu.memory_space<vmem>>, %arg7: memref<1x32xf32, #tpu.memory_space<vmem>>, %arg8: memref<1x32xf32, #tpu.memory_space<vmem>>, %arg9: memref<1x8x32xf32, #tpu.memory_space<vmem>>) attributes {dimension_semantics = [#tpu.dimension_semantics<parallel>, #tpu.dimension_semantics<parallel>], iteration_bounds = array<i64: 2, 1>, scalar_prefetch = 0 : i64, scratch_operands = 0 : i64, tpu.core_type = #tpu.core_type<tc>, window_params = [{transform_indices = @transform_0, window_bounds = array<i64: 1, 8, 32>}, {pipeline_mode = #tpu.pipeline_mode<synchronous>, transform_indices = @transform_1, window_bounds = array<i64: 32, 32>}, {pipeline_mode = #tpu.pipeline_mode<synchronous>, transform_indices = @transform_2, window_bounds = array<i64: 32, 64>}, {pipeline_mode = #tpu.pipeline_mode<synchronous>, transform_indices = @transform_3, window_bounds = array<i64: 32, 32>}, {pipeline_mode = #tpu.pipeline_mode<synchronous>, transform_indices = @transform_4, window_bounds = array<i64: 1, 32>}, {pipeline_mode = #tpu.pipeline_mode<synchronous>, transform_indices = @transform_5, window_bounds = array<i64: 1, 32>}, {pipeline_mode = #tpu.pipeline_mode<synchronous>, transform_indices = @transform_6, window_bounds = array<i64: 1, 32>}, {transform_indices = @transform_7, window_bounds = array<i64: 1, 8, 32>}]} {
    %c0 = arith.constant 0 : index
    %c0_0 = arith.constant 0 : index
    %c0_1 = arith.constant 0 : index
    %0 = vector.load %arg2[%c0, %c0_0, %c0_1] : memref<1x8x32xf32, #tpu.memory_space<vmem>>, vector<1x8x32xf32>
    %1 = vector.shape_cast %0 : vector<1x8x32xf32> to vector<8x32xf32>
    %c0_2 = arith.constant 0 : index
    %c0_3 = arith.constant 0 : index
    %c0_4 = arith.constant 0 : index
    %2 = vector.load %arg2[%c0_2, %c0_3, %c0_4] : memref<1x8x32xf32, #tpu.memory_space<vmem>>, vector<1x8x32xf32>
    %3 = vector.shape_cast %2 : vector<1x8x32xf32> to vector<8x32xf32>
    %c0_5 = arith.constant 0 : index
    %c0_6 = arith.constant 0 : index
    %4 = vector.load %arg3[%c0_5, %c0_6] : memref<32x32xf32, #tpu.memory_space<vmem>>, vector<32x32xf32>
    %cst = arith.constant dense<0.000000e+00> : vector<8x32xf32>
    %5 = tpu.matmul %1, %4, %cst {dimension_numbers = #tpu.dot_dimension_numbers<[1], [0], [0], [1], [0, 0, 1, 1], [], []>} : vector<8x32xf32>, vector<32x32xf32>, vector<8x32xf32> -> vector<8x32xf32>
    %cst_7 = arith.constant 0.353553385 : f32
    %6 = vector.broadcast %cst_7 : f32 to vector<8x32xf32>
    %7 = arith.mulf %5, %6 : vector<8x32xf32>
    %c0_8 = arith.constant 0 : index
    %c0_9 = arith.constant 0 : index
    %8 = vector.load %arg4[%c0_8, %c0_9] : memref<32x64xf32, #tpu.memory_space<vmem>>, vector<32x64xf32>
    %cst_10 = arith.constant dense<0.000000e+00> : vector<8x64xf32>
    %9 = tpu.matmul %3, %8, %cst_10 {dimension_numbers = #tpu.dot_dimension_numbers<[1], [0], [0], [1], [0, 0, 1, 1], [], []>} : vector<8x32xf32>, vector<32x64xf32>, vector<8x64xf32> -> vector<8x64xf32>
    %10 = vector.extract_strided_slice %9 {offsets = [0, 0], sizes = [8, 32], strides = [1, 1]} : vector<8x64xf32> to vector<8x32xf32>
    %11 = vector.extract_strided_slice %9 {offsets = [0, 32], sizes = [8, 32], strides = [1, 1]} : vector<8x64xf32> to vector<8x32xf32>
    %c8_i32 = arith.constant 8 : i32
    %12 = arith.muli %arg1, %c8_i32 : i32
    %13 = tpu.iota {dimensions = array<i32: 0>} : vector<8x8xi32>
    %14 = vector.broadcast %12 : i32 to vector<8x8xi32>
    %15 = arith.addi %14, %13 : vector<8x8xi32>
    %16 = tpu.iota {dimensions = array<i32: 1>} : vector<8x8xi32>
    %17 = arith.cmpi sge, %16, %15 : vector<8x8xi32>
    %18 = vector.extract_strided_slice %7 {offsets = [0, 0], sizes = [8, 8], strides = [1, 1]} : vector<8x32xf32> to vector<8x8xf32>
    %19 = vector.extract_strided_slice %10 {offsets = [0, 0], sizes = [8, 8], strides = [1, 1]} : vector<8x32xf32> to vector<8x8xf32>
    %cst_11 = arith.constant dense<0.000000e+00> : vector<8x8xf32>
    %20 = tpu.matmul %18, %19, %cst_11 {dimension_numbers = #tpu.dot_dimension_numbers<[1], [1], [0], [0], [0, 0, 1, 0], [], []>} : vector<8x8xf32>, vector<8x8xf32>, vector<8x8xf32> -> vector<8x8xf32>
    %cst_12 = arith.constant -1.000000e+30 : f32
    %21 = vector.broadcast %cst_12 : f32 to vector<8x8xf32>
    %22 = arith.select %17, %20, %21 : vector<8x8xi1>, vector<8x8xf32>
    %cst_13 = arith.constant dense<0xFF800000> : vector<8xf32>
    %23 = vector.multi_reduction <maximumf>, %22, %cst_13 [1] : vector<8x8xf32> to vector<8xf32>
    %24 = vector.shape_cast %23 : vector<8xf32> to vector<8x1xf32>
    %25 = vector.broadcast %24 : vector<8x1xf32> to vector<8x8xf32>
    %26 = arith.subf %22, %25 : vector<8x8xf32>
    %27 = math.exp %26 : vector<8x8xf32>
    %cst_14 = arith.constant dense<0.000000e+00> : vector<8xf32>
    %28 = vector.multi_reduction <add>, %27, %cst_14 [1] : vector<8x8xf32> to vector<8xf32>
    %29 = vector.shape_cast %28 : vector<8xf32> to vector<8x1xf32>
    %30 = tpu.reciprocal %29 {approx = true} : vector<8x1xf32> -> vector<8x1xf32>
    %31 = vector.broadcast %30 : vector<8x1xf32> to vector<8x8xf32>
    %32 = arith.mulf %27, %31 : vector<8x8xf32>
    %33 = vector.extract_strided_slice %11 {offsets = [0, 0], sizes = [8, 8], strides = [1, 1]} : vector<8x32xf32> to vector<8x8xf32>
    %cst_15 = arith.constant dense<0.000000e+00> : vector<8x8xf32>
    %34 = tpu.matmul %32, %33, %cst_15 {dimension_numbers = #tpu.dot_dimension_numbers<[1], [0], [0], [1], [0, 0, 1, 1], [], []>} : vector<8x8xf32>, vector<8x8xf32>, vector<8x8xf32> -> vector<8x8xf32>
    %35 = vector.extract_strided_slice %7 {offsets = [0, 8], sizes = [8, 8], strides = [1, 1]} : vector<8x32xf32> to vector<8x8xf32>
    %36 = vector.extract_strided_slice %10 {offsets = [0, 8], sizes = [8, 8], strides = [1, 1]} : vector<8x32xf32> to vector<8x8xf32>
    %cst_16 = arith.constant dense<0.000000e+00> : vector<8x8xf32>
    %37 = tpu.matmul %35, %36, %cst_16 {dimension_numbers = #tpu.dot_dimension_numbers<[1], [1], [0], [0], [0, 0, 1, 0], [], []>} : vector<8x8xf32>, vector<8x8xf32>, vector<8x8xf32> -> vector<8x8xf32>
    %cst_17 = arith.constant -1.000000e+30 : f32
    %38 = vector.broadcast %cst_17 : f32 to vector<8x8xf32>
    %39 = arith.select %17, %37, %38 : vector<8x8xi1>, vector<8x8xf32>
    %cst_18 = arith.constant dense<0xFF800000> : vector<8xf32>
    %40 = vector.multi_reduction <maximumf>, %39, %cst_18 [1] : vector<8x8xf32> to vector<8xf32>
    %41 = vector.shape_cast %40 : vector<8xf32> to vector<8x1xf32>
    %42 = vector.broadcast %41 : vector<8x1xf32> to vector<8x8xf32>
    %43 = arith.subf %39, %42 : vector<8x8xf32>
    %44 = math.exp %43 : vector<8x8xf32>
    %cst_19 = arith.constant dense<0.000000e+00> : vector<8xf32>
    %45 = vector.multi_reduction <add>, %44, %cst_19 [1] : vector<8x8xf32> to vector<8xf32>
    %46 = vector.shape_cast %45 : vector<8xf32> to vector<8x1xf32>
    %47 = tpu.reciprocal %46 {approx = true} : vector<8x1xf32> -> vector<8x1xf32>
    %48 = vector.broadcast %47 : vector<8x1xf32> to vector<8x8xf32>
    %49 = arith.mulf %44, %48 : vector<8x8xf32>
    %50 = vector.extract_strided_slice %11 {offsets = [0, 8], sizes = [8, 8], strides = [1, 1]} : vector<8x32xf32> to vector<8x8xf32>
    %cst_20 = arith.constant dense<0.000000e+00> : vector<8x8xf32>
    %51 = tpu.matmul %49, %50, %cst_20 {dimension_numbers = #tpu.dot_dimension_numbers<[1], [0], [0], [1], [0, 0, 1, 1], [], []>} : vector<8x8xf32>, vector<8x8xf32>, vector<8x8xf32> -> vector<8x8xf32>
    %52 = vector.extract_strided_slice %7 {offsets = [0, 16], sizes = [8, 8], strides = [1, 1]} : vector<8x32xf32> to vector<8x8xf32>
    %53 = vector.extract_strided_slice %10 {offsets = [0, 16], sizes = [8, 8], strides = [1, 1]} : vector<8x32xf32> to vector<8x8xf32>
    %cst_21 = arith.constant dense<0.000000e+00> : vector<8x8xf32>
    %54 = tpu.matmul %52, %53, %cst_21 {dimension_numbers = #tpu.dot_dimension_numbers<[1], [1], [0], [0], [0, 0, 1, 0], [], []>} : vector<8x8xf32>, vector<8x8xf32>, vector<8x8xf32> -> vector<8x8xf32>
    %cst_22 = arith.constant -1.000000e+30 : f32
    %55 = vector.broadcast %cst_22 : f32 to vector<8x8xf32>
    %56 = arith.select %17, %54, %55 : vector<8x8xi1>, vector<8x8xf32>
    %cst_23 = arith.constant dense<0xFF800000> : vector<8xf32>
    %57 = vector.multi_reduction <maximumf>, %56, %cst_23 [1] : vector<8x8xf32> to vector<8xf32>
    %58 = vector.shape_cast %57 : vector<8xf32> to vector<8x1xf32>
    %59 = vector.broadcast %58 : vector<8x1xf32> to vector<8x8xf32>
    %60 = arith.subf %56, %59 : vector<8x8xf32>
    %61 = math.exp %60 : vector<8x8xf32>
    %cst_24 = arith.constant dense<0.000000e+00> : vector<8xf32>
    %62 = vector.multi_reduction <add>, %61, %cst_24 [1] : vector<8x8xf32> to vector<8xf32>
    %63 = vector.shape_cast %62 : vector<8xf32> to vector<8x1xf32>
    %64 = tpu.reciprocal %63 {approx = true} : vector<8x1xf32> -> vector<8x1xf32>
    %65 = vector.broadcast %64 : vector<8x1xf32> to vector<8x8xf32>
    %66 = arith.mulf %61, %65 : vector<8x8xf32>
    %67 = vector.extract_strided_slice %11 {offsets = [0, 16], sizes = [8, 8], strides = [1, 1]} : vector<8x32xf32> to vector<8x8xf32>
    %cst_25 = arith.constant dense<0.000000e+00> : vector<8x8xf32>
    %68 = tpu.matmul %66, %67, %cst_25 {dimension_numbers = #tpu.dot_dimension_numbers<[1], [0], [0], [1], [0, 0, 1, 1], [], []>} : vector<8x8xf32>, vector<8x8xf32>, vector<8x8xf32> -> vector<8x8xf32>
    %69 = vector.extract_strided_slice %7 {offsets = [0, 24], sizes = [8, 8], strides = [1, 1]} : vector<8x32xf32> to vector<8x8xf32>
    %70 = vector.extract_strided_slice %10 {offsets = [0, 24], sizes = [8, 8], strides = [1, 1]} : vector<8x32xf32> to vector<8x8xf32>
    %cst_26 = arith.constant dense<0.000000e+00> : vector<8x8xf32>
    %71 = tpu.matmul %69, %70, %cst_26 {dimension_numbers = #tpu.dot_dimension_numbers<[1], [1], [0], [0], [0, 0, 1, 0], [], []>} : vector<8x8xf32>, vector<8x8xf32>, vector<8x8xf32> -> vector<8x8xf32>
    %cst_27 = arith.constant -1.000000e+30 : f32
    %72 = vector.broadcast %cst_27 : f32 to vector<8x8xf32>
    %73 = arith.select %17, %71, %72 : vector<8x8xi1>, vector<8x8xf32>
    %cst_28 = arith.constant dense<0xFF800000> : vector<8xf32>
    %74 = vector.multi_reduction <maximumf>, %73, %cst_28 [1] : vector<8x8xf32> to vector<8xf32>
    %75 = vector.shape_cast %74 : vector<8xf32> to vector<8x1xf32>
    %76 = vector.broadcast %75 : vector<8x1xf32> to vector<8x8xf32>
    %77 = arith.subf %73, %76 : vector<8x8xf32>
    %78 = math.exp %77 : vector<8x8xf32>
    %cst_29 = arith.constant dense<0.000000e+00> : vector<8xf32>
    %79 = vector.multi_reduction <add>, %78, %cst_29 [1] : vector<8x8xf32> to vector<8xf32>
    %80 = vector.shape_cast %79 : vector<8xf32> to vector<8x1xf32>
    %81 = tpu.reciprocal %80 {approx = true} : vector<8x1xf32> -> vector<8x1xf32>
    %82 = vector.broadcast %81 : vector<8x1xf32> to vector<8x8xf32>
    %83 = arith.mulf %78, %82 : vector<8x8xf32>
    %84 = vector.extract_strided_slice %11 {offsets = [0, 24], sizes = [8, 8], strides = [1, 1]} : vector<8x32xf32> to vector<8x8xf32>
    %cst_30 = arith.constant dense<0.000000e+00> : vector<8x8xf32>
    %85 = tpu.matmul %83, %84, %cst_30 {dimension_numbers = #tpu.dot_dimension_numbers<[1], [0], [0], [1], [0, 0, 1, 1], [], []>} : vector<8x8xf32>, vector<8x8xf32>, vector<8x8xf32> -> vector<8x8xf32>
    %86 = tpu.concatenate %34, %51, %68, %85 in 1 : vector<8x8xf32>, vector<8x8xf32>, vector<8x8xf32>, vector<8x8xf32> -> vector<8x32xf32>
    %c0_31 = arith.constant 0 : index
    %c0_32 = arith.constant 0 : index
    %87 = vector.load %arg5[%c0_31, %c0_32] : memref<32x32xf32, #tpu.memory_space<vmem>>, vector<32x32xf32>
    %cst_33 = arith.constant dense<0.000000e+00> : vector<8x32xf32>
    %88 = tpu.matmul %86, %87, %cst_33 {dimension_numbers = #tpu.dot_dimension_numbers<[1], [0], [0], [1], [0, 0, 1, 1], [], []>} : vector<8x32xf32>, vector<32x32xf32>, vector<8x32xf32> -> vector<8x32xf32>
    %c0_34 = arith.constant 0 : index
    %c0_35 = arith.constant 0 : index
    %89 = vector.load %arg6[%c0_34, %c0_35] : memref<1x32xf32, #tpu.memory_space<vmem>>, vector<1x32xf32>
    %90 = vector.broadcast %89 : vector<1x32xf32> to vector<8x32xf32>
    %91 = arith.addf %88, %90 : vector<8x32xf32>
    %92 = arith.addf %91, %1 : vector<8x32xf32>
    %cst_36 = arith.constant dense<0.000000e+00> : vector<8xf32>
    %93 = vector.multi_reduction <add>, %92, %cst_36 [1] : vector<8x32xf32> to vector<8xf32>
    %94 = vector.shape_cast %93 : vector<8xf32> to vector<8x1xf32>
    %cst_37 = arith.constant 3.200000e+01 : f32
    %95 = vector.broadcast %cst_37 : f32 to vector<8x1xf32>
    %96 = arith.divf %94, %95 : vector<8x1xf32>
    %97 = vector.broadcast %96 : vector<8x1xf32> to vector<8x32xf32>
    %98 = arith.subf %92, %97 : vector<8x32xf32>
    %99 = arith.mulf %98, %98 : vector<8x32xf32>
    %cst_38 = arith.constant dense<0.000000e+00> : vector<8xf32>
    %100 = vector.multi_reduction <add>, %99, %cst_38 [1] : vector<8x32xf32> to vector<8xf32>
    %101 = vector.shape_cast %100 : vector<8xf32> to vector<8x1xf32>
    %cst_39 = arith.constant 3.200000e+01 : f32
    %102 = vector.broadcast %cst_39 : f32 to vector<8x1xf32>
    %103 = arith.divf %101, %102 : vector<8x1xf32>
    %cst_40 = arith.constant 9.99999974E-6 : f32
    %104 = vector.broadcast %cst_40 : f32 to vector<8x1xf32>
    %105 = arith.addf %103, %104 : vector<8x1xf32>
    %106 = math.rsqrt %105 : vector<8x1xf32>
    %107 = vector.broadcast %106 : vector<8x1xf32> to vector<8x32xf32>
    %108 = arith.mulf %98, %107 : vector<8x32xf32>
    %c0_41 = arith.constant 0 : index
    %c0_42 = arith.constant 0 : index
    %109 = vector.load %arg7[%c0_41, %c0_42] : memref<1x32xf32, #tpu.memory_space<vmem>>, vector<1x32xf32>
    %110 = vector.broadcast %109 : vector<1x32xf32> to vector<8x32xf32>
    %111 = arith.mulf %108, %110 : vector<8x32xf32>
    %c0_43 = arith.constant 0 : index
    %c0_44 = arith.constant 0 : index
    %112 = vector.load %arg8[%c0_43, %c0_44] : memref<1x32xf32, #tpu.memory_space<vmem>>, vector<1x32xf32>
    %113 = vector.broadcast %112 : vector<1x32xf32> to vector<8x32xf32>
    %114 = arith.addf %111, %113 : vector<8x32xf32>
    %c0_45 = arith.constant 0 : index
    %c0_46 = arith.constant 0 : index
    %c0_47 = arith.constant 0 : index
    %115 = vector.load %arg9[%c0_45, %c0_46, %c0_47] : memref<1x8x32xf32, #tpu.memory_space<vmem>>, vector<1x8x32xf32>
    %116 = vector.shape_cast %115 : vector<1x8x32xf32> to vector<8x32xf32>
    %117 = vector.shape_cast %114 : vector<8x32xf32> to vector<1x8x32xf32>
    tpu.vector_store %arg9[%c0_45, %c0_46, %c0_47], %117 {strides = array<i32>} : memref<1x8x32xf32, #tpu.memory_space<vmem>>, vector<1x8x32xf32>,
    return
  }
  func.func @transform_0(%arg0: i32, %arg1: i32) -> (i32, i32, i32) {
    %c0_i32 = arith.constant 0 : i32
    %c0_i32_0 = arith.constant 0 : i32
    return %arg0, %arg1, %c0_i32 : i32, i32, i32
  }
  func.func @transform_1(%arg0: i32, %arg1: i32) -> (i32, i32) {
    %c0_i32 = arith.constant 0 : i32
    %c0_i32_0 = arith.constant 0 : i32
    %c0_i32_1 = arith.constant 0 : i32
    return %c0_i32, %c0_i32_0 : i32, i32
  }
  func.func @transform_2(%arg0: i32, %arg1: i32) -> (i32, i32) {
    %c0_i32 = arith.constant 0 : i32
    %c0_i32_0 = arith.constant 0 : i32
    %c0_i32_1 = arith.constant 0 : i32
    return %c0_i32, %c0_i32_0 : i32, i32
  }
  func.func @transform_3(%arg0: i32, %arg1: i32) -> (i32, i32) {
    %c0_i32 = arith.constant 0 : i32
    %c0_i32_0 = arith.constant 0 : i32
    %c0_i32_1 = arith.constant 0 : i32
    return %c0_i32, %c0_i32_0 : i32, i32
  }
  func.func @transform_4(%arg0: i32, %arg1: i32) -> (i32, i32) {
    %c0_i32 = arith.constant 0 : i32
    %c0_i32_0 = arith.constant 0 : i32
    %c0_i32_1 = arith.constant 0 : i32
    return %c0_i32, %c0_i32_0 : i32, i32
  }
  func.func @transform_5(%arg0: i32, %arg1: i32) -> (i32, i32) {
    %c0_i32 = arith.constant 0 : i32
    %c0_i32_0 = arith.constant 0 : i32
    %c0_i32_1 = arith.constant 0 : i32
    return %c0_i32, %c0_i32_0 : i32, i32
  }
  func.func @transform_6(%arg0: i32, %arg1: i32) -> (i32, i32) {
    %c0_i32 = arith.constant 0 : i32
    %c0_i32_0 = arith.constant 0 : i32
    %c0_i32_1 = arith.constant 0 : i32
    return %c0_i32, %c0_i32_0 : i32, i32
  }
  func.func @transform_7(%arg0: i32, %arg1: i32) -> (i32, i32, i32) {
    %c0_i32 = arith.constant 0 : i32
    %c0_i32_0 = arith.constant 0 : i32
    return %arg0, %arg1, %c0_i32 : i32, i32, i32
  }
}

</mosaic_0001>

<llo_original>
// kernel: tpu_custom_call.1
$region0: #{tpu_custom_call.1}
  #allocation0 [shape = 'u32[]', space=smem, size = 0x4, offset = 0x4, fixed_abs, tag = 'smem constant byte address 0x4 - core index']
  #allocation1 [shape = 'u32[72,128]{1,0:T(1,128)}', space=vmem, size = 0x9000, scoped, tag = 'internal scratch']
  %s0 = inlined_call_operand.hbm [shape: f32[2,8,32], index: 0, kind: input, shape index: {}]
  %s1 = inlined_call_operand.hbm [shape: f32[32,32], index: 1, kind: input, shape index: {}]
  %s2 = inlined_call_operand.hbm [shape: f32[32,64], index: 2, kind: input, shape index: {}]
  %s3 = inlined_call_operand.hbm [shape: f32[32,32], index: 3, kind: input, shape index: {}]
  %s4 = inlined_call_operand.vmem [shape: f32[1,32], index: 4, kind: input, shape index: {}]
  %s5 = inlined_call_operand.vmem [shape: f32[1,32], index: 5, kind: input, shape index: {}]
  %s6 = inlined_call_operand.vmem [shape: f32[1,32], index: 6, kind: input, shape index: {}]
  %s7 = inlined_call_operand.hbm [shape: f32[2,8,32], index: 7, kind: output, shape index: {}]
  %s8 = sld [smem:[#allocation0]]
  $region77: #{tpu_custom_call.1} parent=0
    _
  %s10 = ssub.s32 1, %s8
  %s11 = scalar_select 0, %s10, %s8
  $region1: #{tpu_custom_call.1} parent=0
    #allocation2 [shape = 'u8[8192]{0}', space=vmem, size = 0x2000, scoped, tag = 'input window, operand 0']
    #allocation3 [shape = 's32[2]{0}', space=sflag, size = 0x8, scoped, tag = 'scoped memory for tpu_custom_call.1']
    #allocation4 [shape = 's32[2]{0}', space=sflag, size = 0x8, scoped, tag = 'scoped memory for tpu_custom_call.1']
    #allocation5 [shape = 'u8[16384]{0}', space=vmem, size = 0x4000, scoped, tag = 'input window, operand 1, single buffered']
    #allocation6 [shape = 's32[1]{0}', space=sflag, size = 0x4, scoped, tag = 'scoped memory for tpu_custom_call.1']
    #allocation7 [shape = 'u8[16384]{0}', space=vmem, size = 0x4000, scoped, tag = 'input window, operand 2, single buffered']
    #allocation8 [shape = 'u8[16384]{0}', space=vmem, size = 0x4000, scoped, tag = 'input window, operand 3, single buffered']
    #allocation9 [shape = 's32[1]{0}', space=sflag, size = 0x4, scoped, tag = 'scoped memory for tpu_custom_call.1']
    #allocation10 [shape = 'u8[8192]{0}', space=vmem, size = 0x2000, scoped, tag = 'output window, operand 0']
    %12 = vsyncpa [#allocation3], 0
    %s13 = scalar_lea.sflag [#allocation3], 1
    %14 = vsyncpa %s13, 0
    %15 = vsyncpa [#allocation6], 0
    %16 = vsyncpa [#allocation9], 0
    %17 = vsyncpa [#allocation4], 0
    %s18 = scalar_lea.sflag [#allocation4], 1
    %19 = vsyncpa %s18, 0
    loop: start=0, step=1, limit=4
    $region2: #{tpu_custom_call.1} parent=1 // loop_pre_header
      _
    $region3: #{tpu_custom_call.1} parent=1 // loop_header
      %s21 = sphi 0, %s25
      %p22 = scmp.ge.s32.totalorder %s21, 4
      %s28 = sphi 0, %s40
      %s29 = sphi 0, %s36
      %s30 = sphi 0, %s28
      %s31 = sphi 0, %s29
      %s32 = sphi 0, %s30
      %s33 = sphi 0, %s31
      %s45 = sphi 0, %s47
      %s48 = sphi 0, %s45
      %s49 = sphi 0, %s48
      %s65 = sphi 0, %s49
      %s69 = sphi 0, %s69
      %s71 = sphi 0, %s69
      %s72 = sphi 0, %s71
      %s86 = sphi 0, %s72
      %s90 = sphi 0, %s90
      %s92 = sphi 0, %s90
      %s93 = sphi 0, %s92
      %s107 = sphi 0, %s93
      %s111 = sphi 0, %s111
      %s113 = sphi 0, %s111
      %s114 = sphi 0, %s113
      %s128 = sphi 0, %s114
      %s132 = sphi 0, %s132
      %s134 = sphi 0, %s132
      %s135 = sphi 0, %s134
      %s149 = sphi 0, %s135
      %s153 = sphi 0, %s153
      %s155 = sphi 0, %s153
      %s156 = sphi 0, %s155
      %s170 = sphi 0, %s156
      %s174 = sphi 0, %s174
      %s176 = sphi 0, %s174
      %s177 = sphi 0, %s176
      %s191 = sphi 0, %s177
      %s199 = sphi 0, %s201
      %s202 = sphi 0, %s199
      %s203 = sphi 0, %s202
      %s219 = sphi 0, %s203
    $region4: #{tpu_custom_call.1} parent=1 // loop_header_branch
      %24 = sbr.rel (%p22) target = $region8
    $region5: #{tpu_custom_call.1} parent=1 // loop_body
      %s26 = ssub.s32 %s21, 1
      %s27 = ssub.s32 %s21, 2
      %s34 = sadd.s32 1, %s29
      %p35 = scmp.ge.s32.totalorder %s34, 1
      %s36 = scalar_select %p35, 0, %s34
      %s37 = sadd.s32 1, %s28
      %s38 = scalar_select %p35, %s37, %s28
      %p39 = scmp.ge.s32.totalorder %s38, 2
      %s40 = scalar_select %p39, 0, %s38
      %s41 = ssub.s32 %s28, %s40
      %s42 = ssub.s32 %s29, %s36
      %s43 = sor.u32 %s41, %s42
      %p44 = scmp.eq.s32.totalorder %s43, 0
      %s46 = sadd.s32 %s45, 1
      %s47 = scalar_select %p44, %s45, %s46
      %p50 = pneg %p44
      %p51 = scmp.eq.s32.totalorder %s21, 1
      %p52 = por %p50, %p51
      %p53 = scmp.ne.s32.totalorder %s45, %s48
      %p54 = scmp.eq.s32.totalorder %s21, 0
      %p55 = por %p53, %p54
      %p56 = scmp.ne.s32.totalorder %s45, %s48
      %p57 = scmp.eq.s32.totalorder %s26, 1
      %p58 = por %p56, %p57
      %p59 = scmp.ne.s32.totalorder %s48, %s49
      %p60 = scmp.eq.s32.totalorder %s26, 0
      %p61 = por %p59, %p60
      %p62 = scmp.ne.s32.totalorder %s48, %s49
      %p63 = scmp.eq.s32.totalorder %s27, 1
      %p64 = por %p62, %p63
      %p66 = scmp.ne.s32.totalorder %s49, %s65
      %p67 = scmp.eq.s32.totalorder %s27, 0
      %p68 = por %p66, %p67
      %s70 = sadd.s32 %s69, 1
      %p73 = scmp.eq.s32.totalorder %s21, 1
      %p74 = scmp.ne.s32.totalorder %s69, %s71
      %p75 = scmp.eq.s32.totalorder %s21, 0
      %p76 = por %p74, %p75
      %p77 = scmp.ne.s32.totalorder %s69, %s71
      %p78 = scmp.eq.s32.totalorder %s26, 1
      %p79 = por %p77, %p78
      %p80 = scmp.ne.s32.totalorder %s71, %s72
      %p81 = scmp.eq.s32.totalorder %s26, 0
      %p82 = por %p80, %p81
      %p83 = scmp.ne.s32.totalorder %s71, %s72
      %p84 = scmp.eq.s32.totalorder %s27, 1
      %p85 = por %p83, %p84
      %p87 = scmp.ne.s32.totalorder %s72, %s86
      %p88 = scmp.eq.s32.totalorder %s27, 0
      %p89 = por %p87, %p88
      %s91 = sadd.s32 %s90, 1
      %p94 = scmp.eq.s32.totalorder %s21, 1
      %p95 = scmp.ne.s32.totalorder %s90, %s92
      %p96 = scmp.eq.s32.totalorder %s21, 0
      %p97 = por %p95, %p96
      %p98 = scmp.ne.s32.totalorder %s90, %s92
      %p99 = scmp.eq.s32.totalorder %s26, 1
      %p100 = por %p98, %p99
      %p101 = scmp.ne.s32.totalorder %s92, %s93
      %p102 = scmp.eq.s32.totalorder %s26, 0
      %p103 = por %p101, %p102
      %p104 = scmp.ne.s32.totalorder %s92, %s93
      %p105 = scmp.eq.s32.totalorder %s27, 1
      %p106 = por %p104, %p105
      %p108 = scmp.ne.s32.totalorder %s93, %s107
      %p109 = scmp.eq.s32.totalorder %s27, 0
      %p110 = por %p108, %p109
      %s112 = sadd.s32 %s111, 1
      %p115 = scmp.eq.s32.totalorder %s21, 1
      %p116 = scmp.ne.s32.totalorder %s111, %s113
      %p117 = scmp.eq.s32.totalorder %s21, 0
      %p118 = por %p116, %p117
      %p119 = scmp.ne.s32.totalorder %s111, %s113
      %p120 = scmp.eq.s32.totalorder %s26, 1
      %p121 = por %p119, %p120
      %p122 = scmp.ne.s32.totalorder %s113, %s114
      %p123 = scmp.eq.s32.totalorder %s26, 0
      %p124 = por %p122, %p123
      %p125 = scmp.ne.s32.totalorder %s113, %s114
      %p126 = scmp.eq.s32.totalorder %s27, 1
      %p127 = por %p125, %p126
      %p129 = scmp.ne.s32.totalorder %s114, %s128
      %p130 = scmp.eq.s32.totalorder %s27, 0
      %p131 = por %p129, %p130
      %s133 = sadd.s32 %s132, 1
      %p136 = scmp.eq.s32.totalorder %s21, 1
      %p137 = scmp.ne.s32.totalorder %s132, %s134
      %p138 = scmp.eq.s32.totalorder %s21, 0
      %p139 = por %p137, %p138
      %p140 = scmp.ne.s32.totalorder %s132, %s134
      %p141 = scmp.eq.s32.totalorder %s26, 1
      %p142 = por %p140, %p141
      %p143 = scmp.ne.s32.totalorder %s134, %s135
      %p144 = scmp.eq.s32.totalorder %s26, 0
      %p145 = por %p143, %p144
      %p146 = scmp.ne.s32.totalorder %s134, %s135
      %p147 = scmp.eq.s32.totalorder %s27, 1
      %p148 = por %p146, %p147
      %p150 = scmp.ne.s32.totalorder %s135, %s149
      %p151 = scmp.eq.s32.totalorder %s27, 0
      %p152 = por %p150, %p151
      %s154 = sadd.s32 %s153, 1
      %p157 = scmp.eq.s32.totalorder %s21, 1
      %p158 = scmp.ne.s32.totalorder %s153, %s155
      %p159 = scmp.eq.s32.totalorder %s21, 0
      %p160 = por %p158, %p159
      %p161 = scmp.ne.s32.totalorder %s153, %s155
      %p162 = scmp.eq.s32.totalorder %s26, 1
      %p163 = por %p161, %p162
      %p164 = scmp.ne.s32.totalorder %s155, %s156
      %p165 = scmp.eq.s32.totalorder %s26, 0
      %p166 = por %p164, %p165
      %p167 = scmp.ne.s32.totalorder %s155, %s156
      %p168 = scmp.eq.s32.totalorder %s27, 1
      %p169 = por %p167, %p168
      %p171 = scmp.ne.s32.totalorder %s156, %s170
      %p172 = scmp.eq.s32.totalorder %s27, 0
      %p173 = por %p171, %p172
      %s175 = sadd.s32 %s174, 1
      %p178 = scmp.eq.s32.totalorder %s21, 1
      %p179 = scmp.ne.s32.totalorder %s174, %s176
      %p180 = scmp.eq.s32.totalorder %s21, 0
      %p181 = por %p179, %p180
      %p182 = scmp.ne.s32.totalorder %s174, %s176
      %p183 = scmp.eq.s32.totalorder %s26, 1
      %p184 = por %p182, %p183
      %p185 = scmp.ne.s32.totalorder %s176, %s177
      %p186 = scmp.eq.s32.totalorder %s26, 0
      %p187 = por %p185, %p186
      %p188 = scmp.ne.s32.totalorder %s176, %s177
      %p189 = scmp.eq.s32.totalorder %s27, 1
      %p190 = por %p188, %p189
      %p192 = scmp.ne.s32.totalorder %s177, %s191
      %p193 = scmp.eq.s32.totalorder %s27, 0
      %p194 = por %p192, %p193
      %s195 = ssub.s32 %s28, %s40
      %s196 = ssub.s32 %s29, %s36
      %s197 = sor.u32 %s195, %s196
      %p198 = scmp.eq.s32.totalorder %s197, 0
      %s200 = sadd.s32 %s199, 1
      %s201 = scalar_select %p198, %s199, %s200
      %p204 = pneg %p198
      %p205 = scmp.eq.s32.totalorder %s21, 1
      %p206 = por %p204, %p205
      %p207 = scmp.ne.s32.totalorder %s199, %s202
      %p208 = scmp.eq.s32.totalorder %s21, 0
      %p209 = por %p207, %p208
      %p210 = scmp.ne.s32.totalorder %s199, %s202
      %p211 = scmp.eq.s32.totalorder %s26, 1
      %p212 = por %p210, %p211
      %p213 = scmp.ne.s32.totalorder %s202, %s203
      %p214 = scmp.eq.s32.totalorder %s26, 0
      %p215 = por %p213, %p214
      %p216 = scmp.ne.s32.totalorder %s202, %s203
      %p217 = scmp.eq.s32.totalorder %s27, 1
      %p218 = por %p216, %p217
      %p220 = scmp.ne.s32.totalorder %s203, %s219
      %p221 = scmp.eq.s32.totalorder %s27, 0
      %p222 = por %p220, %p221
      %p223 = scmp.le.s32.totalorder 1, %s21
      %p224 = scmp.lt.s32.totalorder %s21, 3
      %p225 = pnand %p223, %p224
      %p226 = pneg %p225
      // Predicated region
      $region9: #{tpu_custom_call.1} parent=5 // pred_check
        _
      $region10: #{tpu_custom_call.1} parent=5 // pred_check_branch
        %228 = sbr.rel (%p225) target = $region12
      $region11: #{tpu_custom_call.1} parent=5 // pred_region
        %s229 = ssub.s32 %s21, 1
        // Predicated region
        $region13: #{tpu_custom_call.1} parent=11 // pred_check
          %p230 = pneg %p82
        $region14: #{tpu_custom_call.1} parent=11 // pred_check_branch
          %232 = sbr.rel (%p230) target = $region16
        $region15: #{tpu_custom_call.1} parent=11 // pred_region
          %234 = vsyncadd [#allocation6], 0
          %s235 = sshll.u32 %s1, 4
          %s236 = int_to_ptr.hbm [resolvable:$true] %s235
          %s237 = sshll.u32 [#allocation5], 4
          %s238 = int_to_ptr.vmem [resolvable:$true] %s237
          %243 = dma.hbm_to_vmem [thread:$0]  %s236, 512, %s238, [#allocation6], 128, 128, 8
        $region16: #{tpu_custom_call.1} parent=11 // pred_fallthru
          _
        // Predicated region
        $region17: #{tpu_custom_call.1} parent=11 // pred_check
          %p244 = pneg %p103
        $region18: #{tpu_custom_call.1} parent=11 // pred_check_branch
          %246 = sbr.rel (%p244) target = $region20
        $region19: #{tpu_custom_call.1} parent=11 // pred_region
          %248 = vsyncadd [#allocation6], 0
          %s249 = sshll.u32 %s2, 4
          %s250 = int_to_ptr.hbm [resolvable:$true] %s249
          %s251 = sshll.u32 [#allocation7], 4
          %s252 = int_to_ptr.vmem [resolvable:$true] %s251
          %257 = dma.hbm_to_vmem [thread:$0]  %s250, 512, %s252, [#allocation6], 128, 128, 8
        $region20: #{tpu_custom_call.1} parent=11 // pred_fallthru
          _
        // Predicated region
        $region21: #{tpu_custom_call.1} parent=11 // pred_check
          %p258 = pneg %p124
        $region22: #{tpu_custom_call.1} parent=11 // pred_check_branch
          %260 = sbr.rel (%p258) target = $region24
        $region23: #{tpu_custom_call.1} parent=11 // pred_region
          %262 = vsyncadd [#allocation9], 0
          %s263 = sshll.u32 %s3, 4
          %s264 = int_to_ptr.hbm [resolvable:$true] %s263
          %s265 = sshll.u32 [#allocation8], 4
          %s266 = int_to_ptr.vmem [resolvable:$true] %s265
          %271 = dma.hbm_to_vmem [thread:$0]  %s264, 512, %s266, [#allocation9], 128, 128, 8
        $region24: #{tpu_custom_call.1} parent=11 // pred_fallthru
          _
        // Predicated region
        $region25: #{tpu_custom_call.1} parent=11 // pred_check
          %p272 = pneg %p145
        $region26: #{tpu_custom_call.1} parent=11 // pred_check_branch
          %274 = sbr.rel (%p272) target = $region28
        $region27: #{tpu_custom_call.1} parent=11 // pred_region
          _
        $region28: #{tpu_custom_call.1} parent=11 // pred_fallthru
          _
        // Predicated region
        $region29: #{tpu_custom_call.1} parent=11 // pred_check
          %p275 = pneg %p166
        $region30: #{tpu_custom_call.1} parent=11 // pred_check_branch
          %277 = sbr.rel (%p275) target = $region32
        $region31: #{tpu_custom_call.1} parent=11 // pred_region
          _
        $region32: #{tpu_custom_call.1} parent=11 // pred_fallthru
          _
        // Predicated region
        $region33: #{tpu_custom_call.1} parent=11 // pred_check
          %p278 = pneg %p187
        $region34: #{tpu_custom_call.1} parent=11 // pred_check_branch
          %280 = sbr.rel (%p278) target = $region36
        $region35: #{tpu_custom_call.1} parent=11 // pred_region
          _
        $region36: #{tpu_custom_call.1} parent=11 // pred_fallthru
          _
      $region12: #{tpu_custom_call.1} parent=5 // pred_fallthru
        _
      %p281 = scmp.lt.s32.totalorder %s21, 2
      // Predicated region
      $region37: #{tpu_custom_call.1} parent=5 // pred_check
        %p282 = pneg %p281
      $region38: #{tpu_custom_call.1} parent=5 // pred_check_branch
        %284 = sbr.rel (%p282) target = $region40
      $region39: #{tpu_custom_call.1} parent=5 // pred_region
        // Predicated region
        $region41: #{tpu_custom_call.1} parent=39 // pred_check
          %p285 = pneg %p55
        $region42: #{tpu_custom_call.1} parent=39 // pred_check_branch
          %287 = sbr.rel (%p285) target = $region44
        $region43: #{tpu_custom_call.1} parent=39 // pred_region
          %s288 = sand.u32 %s45, 1
          %s289 = scalar_lea.sflag [#allocation3], %s288
          %s290 = sand.u32 %s45, 1
          %s291 = smul.addr %s290, 8
          %s292 = scalar_lea.vmem [#allocation2], %s291
          %294 = vsyncadd %s289, 0
          %s295 = sadd.s32 %s29, %s28
          %s296 = smul.addr %s295, 8
          %s297 = scalar_lea.hbm %s0, %s296
          %s299 = sshll.u32 %s297, 4
          %s300 = int_to_ptr.hbm [resolvable:$true] %s299
          %s301 = sshll.u32 %s292, 4
          %s302 = int_to_ptr.vmem [resolvable:$true] %s301
          %304 = dma.hbm_to_vmem [thread:$0]  %s300, 128, %s302, %s289
        $region44: #{tpu_custom_call.1} parent=39 // pred_fallthru
          _
      $region40: #{tpu_custom_call.1} parent=5 // pred_fallthru
        _
      %p305 = scmp.le.s32.totalorder 1, %s21
      %p306 = scmp.lt.s32.totalorder %s21, 3
      %p307 = pnand %p305, %p306
      %p308 = pneg %p307
      // Predicated region
      $region45: #{tpu_custom_call.1} parent=5 // pred_check
        _
      $region46: #{tpu_custom_call.1} parent=5 // pred_check_branch
        %310 = sbr.rel (%p307) target = $region48
      $region47: #{tpu_custom_call.1} parent=5 // pred_region
        %s311 = ssub.s32 %s21, 1
        %s312 = sand.u32 %s48, 1
        %s313 = scalar_lea.sflag [#allocation3], %s312
        %s314 = sand.u32 %s48, 1
        %s315 = smul.addr %s314, 8
        %s316 = scalar_lea.vmem [#allocation2], %s315
        // Predicated region
        $region49: #{tpu_custom_call.1} parent=47 // pred_check
          %p317 = pneg %p61
        $region50: #{tpu_custom_call.1} parent=47 // pred_check_branch
          %319 = sbr.rel (%p317) target = $region52
        $region51: #{tpu_custom_call.1} parent=47 // pred_region
          %321 = dma.done %s313, 128
        $region52: #{tpu_custom_call.1} parent=47 // pred_fallthru
          _
        // Predicated region
        $region53: #{tpu_custom_call.1} parent=47 // pred_check
          %p322 = pneg %p82
        $region54: #{tpu_custom_call.1} parent=47 // pred_check_branch
          %324 = sbr.rel (%p322) target = $region56
        $region55: #{tpu_custom_call.1} parent=47 // pred_region
          %326 = dma.done [#allocation6], 512
        $region56: #{tpu_custom_call.1} parent=47 // pred_fallthru
          _
        // Predicated region
        $region57: #{tpu_custom_call.1} parent=47 // pred_check
          %p327 = pneg %p103
        $region58: #{tpu_custom_call.1} parent=47 // pred_check_branch
          %329 = sbr.rel (%p327) target = $region60
        $region59: #{tpu_custom_call.1} parent=47 // pred_region
          %331 = dma.done [#allocation6], 512
        $region60: #{tpu_custom_call.1} parent=47 // pred_fallthru
          _
        // Predicated region
        $region61: #{tpu_custom_call.1} parent=47 // pred_check
          %p332 = pneg %p124
        $region62: #{tpu_custom_call.1} parent=47 // pred_check_branch
          %334 = sbr.rel (%p332) target = $region64
        $region63: #{tpu_custom_call.1} parent=47 // pred_region
          %336 = dma.done [#allocation9], 512
        $region64: #{tpu_custom_call.1} parent=47 // pred_fallthru
          _
        %s337 = sand.u32 %s48, 1
        %s338 = scalar_lea.sflag [#allocation3], %s337
        %s339 = sand.u32 %s48, 1
        %s340 = smul.addr %s339, 8
        %s341 = scalar_lea.vmem [#allocation2], %s340
        %p342 = pneg %p61
        %p343 = pneg %p58
        %p344 = pneg %p82
        %p345 = pneg %p79
        %p346 = pneg %p103
        %p347 = pneg %p100
        %p348 = pneg %p124
        %p349 = pneg %p121
        %p350 = pneg %p145
        %p351 = pneg %p142
        %p352 = pneg %p166
        %p353 = pneg %p163
        %p354 = pneg %p187
        %p355 = pneg %p184
        %p356 = pneg %p215
        %p357 = pneg %p212
        %s358 = sand.u32 %s202, 1
        %s359 = scalar_lea.sflag [#allocation4], %s358
        %s360 = sand.u32 %s202, 1
        %s361 = smul.addr %s360, 8
        %s362 = scalar_lea.vmem [#allocation10], %s361
        %v363 = vld [vmem:[%s316] sm:$0xff]
        %v364 = vld [vmem:[#allocation5] sm:$0xff]
        %v365 = vld [vmem:[#allocation5 + $0x8] sm:$0xff]
        %v366 = vld [vmem:[#allocation5 + $0x10] sm:$0xff]
        %v367 = vld [vmem:[#allocation5 + $0x18] sm:$0xff]
        %vm368 = vcmask 261120
        %v370 = vsel %vm368, %v363, 0
        %372 = vmatpush.msra.mxu0 0.0
        %373 = vmatpush.msra.mxu0 0.0
        %374 = vmatpush.msra.mxu0 0.0
        %375 = vmatpush.msra.mxu0 0.0
        %376 = vmatpush.msra.mxu0 0.0
        %377 = vmatpush.msra.mxu0 0.0
        %378 = vmatpush.msra.mxu0 0.0
        %379 = vmatpush.msra.mxu0 0.0
        %380 = vmatpush.msra.mxu0 0.0
        %381 = vmatpush.msra.mxu0 0.0
        %382 = vmatpush.msra.mxu0 0.0
        %383 = vmatpush.msra.mxu0 0.0
        %384 = vmatpush.msra.mxu0 %v367
        %385 = vmatpush.msra.mxu0 %v366
        %386 = vmatpush.msra.mxu0 %v365
        %387 = vmatpush.msra.mxu0 %v364
        %388 = vmatmul.f32.gmra.mxu0 %v370
        %v389 = vpop.f32.mrf.mxu0
        %v390 = vadd.f32 0.0, %v389
        %391 = vdwg.mxu0
        %v392 = vmul.f32 %v390, 0.35355338
        %v393 = vld [vmem:[#allocation7] sm:$0xff]
        %v394 = vld [vmem:[#allocation7 + $0x8] sm:$0xff]
        %v395 = vld [vmem:[#allocation7 + $0x10] sm:$0xff]
        %v396 = vld [vmem:[#allocation7 + $0x18] sm:$0xff]
        %397 = vmatpush.msra.mxu0 0.0
        %398 = vmatpush.msra.mxu0 0.0
        %399 = vmatpush.msra.mxu0 0.0
        %400 = vmatpush.msra.mxu0 0.0
        %401 = vmatpush.msra.mxu0 0.0
        %402 = vmatpush.msra.mxu0 0.0
        %403 = vmatpush.msra.mxu0 0.0
        %404 = vmatpush.msra.mxu0 0.0
        %405 = vmatpush.msra.mxu0 0.0
        %406 = vmatpush.msra.mxu0 0.0
        %407 = vmatpush.msra.mxu0 0.0
        %408 = vmatpush.msra.mxu0 0.0
        %409 = vmatpush.msra.mxu0 %v396
        %410 = vmatpush.msra.mxu0 %v395
        %411 = vmatpush.msra.mxu0 %v394
        %412 = vmatpush.msra.mxu0 %v393
        %413 = vmatmul.f32.gmra.mxu0 %v370
        %v414 = vpop.f32.mrf.mxu0
        %v415 = vadd.f32 0.0, %v414
        %416 = vdwg.mxu0
        %s417 = smul.u32 %s31, 8
        %v418 = vlaneseq
        %v419 = vshrl.u32 %v418, 7
        %v420 = vstv %s417
        %v421 = vadd.s32 %v420, %v419
        %v422 = vlaneseq
        %v423 = vand.u32 %v422, 127
        %vm424 = vcmp.ge.s32.totalorder %v423, %v421
        %vm425 = vcmask 64512
        %v427 = vsel %vm425, %v392, 0
        %v430 = vsel %vm425, %v415, 0
        %432 = vmatpush.xpose.msra.mxu0 0.0
        %433 = vmatpush.xpose.msra.mxu0 0.0
        %434 = vmatpush.xpose.msra.mxu0 0.0
        %435 = vmatpush.xpose.msra.mxu0 0.0
        %436 = vmatpush.xpose.msra.mxu0 0.0
        %437 = vmatpush.xpose.msra.mxu0 0.0
        %438 = vmatpush.xpose.msra.mxu0 0.0
        %439 = vmatpush.xpose.msra.mxu0 0.0
        %440 = vmatpush.xpose.msra.mxu0 0.0
        %441 = vmatpush.xpose.msra.mxu0 0.0
        %442 = vmatpush.xpose.msra.mxu0 0.0
        %443 = vmatpush.xpose.msra.mxu0 0.0
        %444 = vmatpush.xpose.msra.mxu0 0.0
        %445 = vmatpush.xpose.msra.mxu0 0.0
        %446 = vmatpush.xpose.msra.mxu0 0.0
        %447 = vmatpush.xpose.msra.mxu0 %v430
        %448 = vmatmul.f32.gmra.mxu0 %v427
        %v449 = vpop.f32.mrf.mxu0
        %v450 = vadd.f32 0.0, %v449
        %451 = vdwg.mxu0
        %v452 = vsel %vm424, %v450, -1e+30
        %v453 = vsel %vm425, %v452, -inf
        %454 = vmax.xlane.f32.xlu0 %v453
        %v455 = vpop.xlane.xlu0 %454
        %v456 = vsub.f32 %v452, %v455
        %v457 = vmul.f32 %v456, 1.442695
        %v458 = vpow.pop %v457
        %v459 = vsel %vm425, %v458, 0.0
        %460 = vadd.xlane.f32.xlu0 %v459
        %v461 = vpop.xlane.xlu0 %460
        %v462 = vrcp.pop %v461
        %v463 = vmul.f32 %v458, %v462
        %464 = vrot.lane.b32.xlu0 %v415, 96
        %v465 = vpop.permute.xlu0 %464
        %v468 = vsel %vm425, %v463, 0
        %470 = vmatpush.msra.mxu0 0.0
        %471 = vmatpush.msra.mxu0 0.0
        %472 = vmatpush.msra.mxu0 0.0
        %473 = vmatpush.msra.mxu0 0.0
        %474 = vmatpush.msra.mxu0 0.0
        %475 = vmatpush.msra.mxu0 0.0
        %476 = vmatpush.msra.mxu0 0.0
        %477 = vmatpush.msra.mxu0 0.0
        %478 = vmatpush.msra.mxu0 0.0
        %479 = vmatpush.msra.mxu0 0.0
        %480 = vmatpush.msra.mxu0 0.0
        %481 = vmatpush.msra.mxu0 0.0
        %482 = vmatpush.msra.mxu0 0.0
        %483 = vmatpush.msra.mxu0 0.0
        %484 = vmatpush.msra.mxu0 0.0
        %485 = vmatpush.msra.mxu0 %v465
        %486 = vmatmul.f32.gmra.mxu0 %v468
        %v487 = vpop.f32.mrf.mxu0
        %v488 = vadd.f32 0.0, %v487
        %489 = vdwg.mxu0
        %490 = vrot.lane.b32.xlu0 %v392, 120
        %v491 = vpop.permute.xlu0 %490
        %492 = vrot.lane.b32.xlu0 %v415, 120
        %v493 = vpop.permute.xlu0 %492
        %v494 = vsel %vm425, %v491, 0
        %v496 = vsel %vm425, %v493, 0
        %498 = vmatpush.xpose.msra.mxu0 0.0
        %499 = vmatpush.xpose.msra.mxu0 0.0
        %500 = vmatpush.xpose.msra.mxu0 0.0
        %501 = vmatpush.xpose.msra.mxu0 0.0
        %502 = vmatpush.xpose.msra.mxu0 0.0
        %503 = vmatpush.xpose.msra.mxu0 0.0
        %504 = vmatpush.xpose.msra.mxu0 0.0
        %505 = vmatpush.xpose.msra.mxu0 0.0
        %506 = vmatpush.xpose.msra.mxu0 0.0
        %507 = vmatpush.xpose.msra.mxu0 0.0
        %508 = vmatpush.xpose.msra.mxu0 0.0
        %509 = vmatpush.xpose.msra.mxu0 0.0
        %510 = vmatpush.xpose.msra.mxu0 0.0
        %511 = vmatpush.xpose.msra.mxu0 0.0
        %512 = vmatpush.xpose.msra.mxu0 0.0
        %513 = vmatpush.xpose.msra.mxu0 %v496
        %514 = vmatmul.f32.gmra.mxu0 %v494
        %v515 = vpop.f32.mrf.mxu0
        %v516 = vadd.f32 0.0, %v515
        %517 = vdwg.mxu0
        %v518 = vsel %vm424, %v516, -1e+30
        %v519 = vsel %vm425, %v518, -inf
        %520 = vmax.xlane.f32.xlu0 %v519
        %v521 = vpop.xlane.xlu0 %520
        %v522 = vsub.f32 %v518, %v521
        %v523 = vmul.f32 %v522, 1.442695
        %v524 = vpow.pop %v523
        %v525 = vsel %vm425, %v524, 0.0
        %526 = vadd.xlane.f32.xlu0 %v525
        %v527 = vpop.xlane.xlu0 %526
        %v528 = vrcp.pop %v527
        %v529 = vmul.f32 %v524, %v528
        %530 = vrot.lane.b32.xlu0 %v415, 88
        %v531 = vpop.permute.xlu0 %530
        %v534 = vsel %vm425, %v529, 0
        %536 = vmatpush.msra.mxu0 0.0
        %537 = vmatpush.msra.mxu0 0.0
        %538 = vmatpush.msra.mxu0 0.0
        %539 = vmatpush.msra.mxu0 0.0
        %540 = vmatpush.msra.mxu0 0.0
        %541 = vmatpush.msra.mxu0 0.0
        %542 = vmatpush.msra.mxu0 0.0
        %543 = vmatpush.msra.mxu0 0.0
        %544 = vmatpush.msra.mxu0 0.0
        %545 = vmatpush.msra.mxu0 0.0
        %546 = vmatpush.msra.mxu0 0.0
        %547 = vmatpush.msra.mxu0 0.0
        %548 = vmatpush.msra.mxu0 0.0
        %549 = vmatpush.msra.mxu0 0.0
        %550 = vmatpush.msra.mxu0 0.0
        %551 = vmatpush.msra.mxu0 %v531
        %552 = vmatmul.f32.gmra.mxu0 %v534
        %v553 = vpop.f32.mrf.mxu0
        %v554 = vadd.f32 0.0, %v553
        %555 = vdwg.mxu0
        %556 = vrot.lane.b32.xlu0 %v392, 112
        %v557 = vpop.permute.xlu0 %556
        %558 = vrot.lane.b32.xlu0 %v415, 112
        %v559 = vpop.permute.xlu0 %558
        %v560 = vsel %vm425, %v557, 0
        %v562 = vsel %vm425, %v559, 0
        %564 = vmatpush.xpose.msra.mxu0 0.0
        %565 = vmatpush.xpose.msra.mxu0 0.0
        %566 = vmatpush.xpose.msra.mxu0 0.0
        %567 = vmatpush.xpose.msra.mxu0 0.0
        %568 = vmatpush.xpose.msra.mxu0 0.0
        %569 = vmatpush.xpose.msra.mxu0 0.0
        %570 = vmatpush.xpose.msra.mxu0 0.0
        %571 = vmatpush.xpose.msra.mxu0 0.0
        %572 = vmatpush.xpose.msra.mxu0 0.0
        %573 = vmatpush.xpose.msra.mxu0 0.0
        %574 = vmatpush.xpose.msra.mxu0 0.0
        %575 = vmatpush.xpose.msra.mxu0 0.0
        %576 = vmatpush.xpose.msra.mxu0 0.0
        %577 = vmatpush.xpose.msra.mxu0 0.0
        %578 = vmatpush.xpose.msra.mxu0 0.0
        %579 = vmatpush.xpose.msra.mxu0 %v562
        %580 = vmatmul.f32.gmra.mxu0 %v560
        %v581 = vpop.f32.mrf.mxu0
        %v582 = vadd.f32 0.0, %v581
        %583 = vdwg.mxu0
        %v584 = vsel %vm424, %v582, -1e+30
        %v585 = vsel %vm425, %v584, -inf
        %586 = vmax.xlane.f32.xlu0 %v585
        %v587 = vpop.xlane.xlu0 %586
        %v588 = vsub.f32 %v584, %v587
        %v589 = vmul.f32 %v588, 1.442695
        %v590 = vpow.pop %v589
        %v591 = vsel %vm425, %v590, 0.0
        %592 = vadd.xlane.f32.xlu0 %v591
        %v593 = vpop.xlane.xlu0 %592
        %v594 = vrcp.pop %v593
        %v595 = vmul.f32 %v590, %v594
        %596 = vrot.lane.b32.xlu0 %v415, 80
        %v597 = vpop.permute.xlu0 %596
        %v600 = vsel %vm425, %v595, 0
        %602 = vmatpush.msra.mxu0 0.0
        %603 = vmatpush.msra.mxu0 0.0
        %604 = vmatpush.msra.mxu0 0.0
        %605 = vmatpush.msra.mxu0 0.0
        %606 = vmatpush.msra.mxu0 0.0
        %607 = vmatpush.msra.mxu0 0.0
        %608 = vmatpush.msra.mxu0 0.0
        %609 = vmatpush.msra.mxu0 0.0
        %610 = vmatpush.msra.mxu0 0.0
        %611 = vmatpush.msra.mxu0 0.0
        %612 = vmatpush.msra.mxu0 0.0
        %613 = vmatpush.msra.mxu0 0.0
        %614 = vmatpush.msra.mxu0 0.0
        %615 = vmatpush.msra.mxu0 0.0
        %616 = vmatpush.msra.mxu0 0.0
        %617 = vmatpush.msra.mxu0 %v597
        %618 = vmatmul.f32.gmra.mxu0 %v600
        %v619 = vpop.f32.mrf.mxu0
        %v620 = vadd.f32 0.0, %v619
        %621 = vdwg.mxu0
        %622 = vrot.lane.b32.xlu0 %v392, 104
        %v623 = vpop.permute.xlu0 %622
        %624 = vrot.lane.b32.xlu0 %v415, 104
        %v625 = vpop.permute.xlu0 %624
        %v626 = vsel %vm425, %v623, 0
        %v628 = vsel %vm425, %v625, 0
        %630 = vmatpush.xpose.msra.mxu0 0.0
        %631 = vmatpush.xpose.msra.mxu0 0.0
        %632 = vmatpush.xpose.msra.mxu0 0.0
        %633 = vmatpush.xpose.msra.mxu0 0.0
        %634 = vmatpush.xpose.msra.mxu0 0.0
        %635 = vmatpush.xpose.msra.mxu0 0.0
        %636 = vmatpush.xpose.msra.mxu0 0.0
        %637 = vmatpush.xpose.msra.mxu0 0.0
        %638 = vmatpush.xpose.msra.mxu0 0.0
        %639 = vmatpush.xpose.msra.mxu0 0.0
        %640 = vmatpush.xpose.msra.mxu0 0.0
        %641 = vmatpush.xpose.msra.mxu0 0.0
        %642 = vmatpush.xpose.msra.mxu0 0.0
        %643 = vmatpush.xpose.msra.mxu0 0.0
        %644 = vmatpush.xpose.msra.mxu0 0.0
        %645 = vmatpush.xpose.msra.mxu0 %v628
        %646 = vmatmul.f32.gmra.mxu0 %v626
        %v647 = vpop.f32.mrf.mxu0
        %v648 = vadd.f32 0.0, %v647
        %649 = vdwg.mxu0
        %v650 = vsel %vm424, %v648, -1e+30
        %v651 = vsel %vm425, %v650, -inf
        %652 = vmax.xlane.f32.xlu0 %v651
        %v653 = vpop.xlane.xlu0 %652
        %v654 = vsub.f32 %v650, %v653
        %v655 = vmul.f32 %v654, 1.442695
        %v656 = vpow.pop %v655
        %v657 = vsel %vm425, %v656, 0.0
        %658 = vadd.xlane.f32.xlu0 %v657
        %v659 = vpop.xlane.xlu0 %658
        %v660 = vrcp.pop %v659
        %v661 = vmul.f32 %v656, %v660
        %662 = vrot.lane.b32.xlu0 %v415, 72
        %v663 = vpop.permute.xlu0 %662
        %v666 = vsel %vm425, %v661, 0
        %668 = vmatpush.msra.mxu0 0.0
        %669 = vmatpush.msra.mxu0 0.0
        %670 = vmatpush.msra.mxu0 0.0
        %671 = vmatpush.msra.mxu0 0.0
        %672 = vmatpush.msra.mxu0 0.0
        %673 = vmatpush.msra.mxu0 0.0
        %674 = vmatpush.msra.mxu0 0.0
        %675 = vmatpush.msra.mxu0 0.0
        %676 = vmatpush.msra.mxu0 0.0
        %677 = vmatpush.msra.mxu0 0.0
        %678 = vmatpush.msra.mxu0 0.0
        %679 = vmatpush.msra.mxu0 0.0
        %680 = vmatpush.msra.mxu0 0.0
        %681 = vmatpush.msra.mxu0 0.0
        %682 = vmatpush.msra.mxu0 0.0
        %683 = vmatpush.msra.mxu0 %v663
        %684 = vmatmul.f32.gmra.mxu0 %v666
        %v685 = vpop.f32.mrf.mxu0
        %v686 = vadd.f32 0.0, %v685
        %687 = vdwg.mxu0
        %689 = vrot.lane.b32.xlu0 %v554, 8
        %v690 = vpop.permute.xlu0 %689
        %693 = vrot.lane.b32.xlu0 %v620, 16
        %v694 = vpop.permute.xlu0 %693
        %697 = vrot.lane.b32.xlu0 %v686, 24
        %v698 = vpop.permute.xlu0 %697
        %v700 = vsel %vm425, %v488, %v690
        %vm701 = vcmask 130048
        %v702 = vsel %vm701, %v700, %v694
        %vm703 = vcmask 195584
        %v704 = vsel %vm703, %v702, %v698
        %v705 = vld [vmem:[#allocation8] sm:$0xff]
        %v706 = vld [vmem:[#allocation8 + $0x8] sm:$0xff]
        %v707 = vld [vmem:[#allocation8 + $0x10] sm:$0xff]
        %v708 = vld [vmem:[#allocation8 + $0x18] sm:$0xff]
        %v709 = vld [vmem:[%s4] sm:$0x1]
        %v711 = vperm.slane %v709, 0
        %v714 = vsel %vm368, %v704, 0
        %716 = vmatpush.msra.mxu0 0.0
        %717 = vmatpush.msra.mxu0 0.0
        %718 = vmatpush.msra.mxu0 0.0
        %719 = vmatpush.msra.mxu0 0.0
        %720 = vmatpush.msra.mxu0 0.0
        %721 = vmatpush.msra.mxu0 0.0
        %722 = vmatpush.msra.mxu0 0.0
        %723 = vmatpush.msra.mxu0 0.0
        %724 = vmatpush.msra.mxu0 0.0
        %725 = vmatpush.msra.mxu0 0.0
        %726 = vmatpush.msra.mxu0 0.0
        %727 = vmatpush.msra.mxu0 0.0
        %728 = vmatpush.msra.mxu0 %v708
        %729 = vmatpush.msra.mxu0 %v707
        %730 = vmatpush.msra.mxu0 %v706
        %731 = vmatpush.msra.mxu0 %v705
        %732 = vmatmul.f32.gmra.mxu0 %v714
        %v733 = vpop.f32.mrf.mxu0
        %v734 = vadd.f32 %v711, %v733
        %735 = vdwg.mxu0
        %v736 = vadd.f32 %v734, %v363
        %v737 = vsel %vm368, %v736, 0.0
        %738 = vadd.xlane.f32.xlu0 %v737
        %v739 = vpop.xlane.xlu0 %738
        %v740 = vrcp.pop 32.0
        %v741 = vmul.f32 32.0, %v740
        %v742 = vsub.f32 1.0, %v741
        %v743 = vmul.f32 %v740, %v742
        %v744 = vadd.f32 %v740, %v743
        %vm745 = vweird.f32 %v740
        %v746 = vsel %vm745, %v740, %v744
        %v747 = vmul.f32 %v739, %v746
        %v748 = vsub.f32 %v736, %v747
        %v749 = vmul.f32 %v748, %v748
        %v750 = vsel %vm368, %v749, 0.0
        %751 = vadd.xlane.f32.xlu0 %v750
        %v752 = vpop.xlane.xlu0 %751
        %v753 = vmul.f32 %v752, %v746
        %v754 = vadd.f32 %v753, 1e-05
        %v755 = vrsqrt.pop %v754
        %v756 = vmul.f32 %v755, %v754
        %v757 = vmul.f32 %v756, %v755
        %v758 = vmul.f32 0.5, %v757
        %v759 = vsub.f32 1.5, %v758
        %v760 = vmul.f32 %v755, %v759
        %vm761 = vweird.f32 %v754
        %vm762 = vweird.f32 %v755
        %vm763 = vmor %vm761, %vm762
        %v764 = vsel %vm763, %v755, %v760
        %v765 = vmul.f32 %v748, %v764
        %v766 = vld [vmem:[%s5] sm:$0x1]
        %v768 = vperm.slane %v766, 0
        %v770 = vmul.f32 %v765, %v768
        %v771 = vld [vmem:[%s6] sm:$0x1]
        %v773 = vperm.slane %v771, 0
        %v775 = vadd.f32 %v770, %v773
        %776 = vst.msk [vmem:[%s362] sm:$0xff] %vm368, %v775
        %s777 = sand.u32 %s202, 1
        %s778 = scalar_lea.sflag [#allocation4], %s777
        %s779 = sand.u32 %s202, 1
        %s780 = smul.addr %s779, 8
        %s781 = scalar_lea.vmem [#allocation10], %s780
        // Predicated region
        $region65: #{tpu_custom_call.1} parent=47 // pred_check
          %p782 = pneg %p212
        $region66: #{tpu_custom_call.1} parent=47 // pred_check_branch
          %784 = sbr.rel (%p782) target = $region68
        $region67: #{tpu_custom_call.1} parent=47 // pred_region
          %786 = vsyncadd %s778, 0
          %s787 = sadd.s32 %s31, %s30
          %s788 = smul.addr %s787, 8
          %s789 = scalar_lea.hbm %s7, %s788
          %s791 = sshll.u32 %s781, 4
          %s792 = int_to_ptr.vmem [resolvable:$true] %s791
          %s793 = sshll.u32 %s789, 4
          %s794 = int_to_ptr.hbm [resolvable:$true] %s793
          %796 = dma.vmem_to_hbm [thread:$0]  %s792, 128, %s794, %s778
        $region68: #{tpu_custom_call.1} parent=47 // pred_fallthru
          _
      $region48: #{tpu_custom_call.1} parent=5 // pred_fallthru
        _
      %p797 = scmp.le.s32.totalorder 2, %s21
      // Predicated region
      $region69: #{tpu_custom_call.1} parent=5 // pred_check
        %p798 = pneg %p797
      $region70: #{tpu_custom_call.1} parent=5 // pred_check_branch
        %800 = sbr.rel (%p798) target = $region72
      $region71: #{tpu_custom_call.1} parent=5 // pred_region
        %s801 = ssub.s32 %s21, 2
        // Predicated region
        $region73: #{tpu_custom_call.1} parent=71 // pred_check
          %p802 = pneg %p218
        $region74: #{tpu_custom_call.1} parent=71 // pred_check_branch
          %804 = sbr.rel (%p802) target = $region76
        $region75: #{tpu_custom_call.1} parent=71 // pred_region
          %s805 = sand.u32 %s203, 1
          %s806 = scalar_lea.sflag [#allocation4], %s805
          %s807 = sand.u32 %s203, 1
          %s808 = smul.addr %s807, 8
          %s809 = scalar_lea.vmem [#allocation10], %s808
          %811 = dma.done %s806, 128
        $region76: #{tpu_custom_call.1} parent=71 // pred_fallthru
          _
      $region72: #{tpu_custom_call.1} parent=5 // pred_fallthru
        _
    $region6: #{tpu_custom_call.1} parent=1 // loop_footer
      %s25 = sadd.s32 1, %s21
    $region7: #{tpu_custom_call.1} parent=1 // loop_footer_branch
      %20 = sbr.rel target = $region3
    $region8: #{tpu_custom_call.1} parent=1 // loop_exit
      _
    %812 = vsyncpa [#allocation3], 1
    %s813 = scalar_lea.sflag [#allocation3], 1
    %814 = vsyncpa %s813, 1
    %815 = vsyncpa [#allocation6], 1
    %816 = vsyncpa [#allocation9], 1
    %817 = vsyncpa [#allocation4], 1
    %s818 = scalar_lea.sflag [#allocation4], 1
    %819 = vsyncpa %s818, 1

</llo_original>
